<compile_context>
chip_gen: v7x
topology: tpu7x:2x2x1
jax: 0.10.0
libtpu: 0.0.40
codegen_flags: <defaults>
</compile_context>

<pallas_src>
import functools

import jax
import jax.numpy as jnp
from jax import lax
from jax.experimental import pallas as pl
from jax.experimental.pallas import tpu as pltpu


def _round_up(x, m):
    return -(-x // m) * m


def _cdiv(a, b):
    return -(-a // b)


# ---------------------------------------------------------------------------
# Kernel 1: per-chunk NLL partial sums (pixel-tiled reduction).
# ---------------------------------------------------------------------------
def _nll_partial_kernel(pred_ref, label_ref, part_ref, acc_ref, *,
                        n_steps, tile_hw, hw_total):
    # pred_ref : (N, C, T) log-probabilities (any float dtype; cast in-kernel)
    # label_ref: (N, T) int32 target class per pixel
    # part_ref : (1, 8, 128) f32 per-chunk partial sum (scalar in [0,0,0])
    # acc_ref  : (N, C, T) f32 vector accumulator (pure VPU add per step)
    t = pl.program_id(1)

    @pl.when(t == 0)
    def _init():
        acc_ref[...] = jnp.zeros_like(acc_ref)

    pred = pred_ref[...].astype(jnp.float32)                 # (N, C, T)
    label = label_ref[...]                                    # (N, T)

    # Global spatial block id (unclamped) -> tail / duplicate-block masking.
    g = pl.program_id(0) * n_steps + t
    shape = pred.shape
    class_ids = lax.broadcasted_iota(jnp.int32, shape, 1)     # class per sublane
    pos = g * tile_hw + lax.broadcasted_iota(jnp.int32, shape, 2)
    mask = (class_ids == label[:, None, :]) & (pos < hw_total)

    # Per-step work is a single masked VPU add; no cross-lane reduce here.
    acc_ref[...] += jnp.where(mask, pred, 0.0)

    @pl.when(t == pl.num_programs(1) - 1)
    def _finalize():
        total = jnp.sum(acc_ref[...])                         # once per chunk
        row = lax.broadcasted_iota(jnp.int32, part_ref.shape, 1)
        lane = lax.broadcasted_iota(jnp.int32, part_ref.shape, 2)
        part_ref[...] = jnp.where((row == 0) & (lane == 0), total, 0.0)


# ---------------------------------------------------------------------------
# Kernel 2: combine partial sums + regularization term (single block).
# ---------------------------------------------------------------------------
def _combine_kernel(part_ref, mat_ref, out_ref, *, inv_p, reg_coef):
    nll = -jnp.sum(part_ref[...]) * jnp.float32(inv_p)
    m = mat_ref[...].astype(jnp.float32)
    out_ref[...] = nll + (m * m) * jnp.float32(reg_coef)


# ---------------------------------------------------------------------------
# Tile sizing from a VMEM byte budget (generation-aware).
# ---------------------------------------------------------------------------
def _vmem_limit_bytes():
    try:
        cap = int(pltpu.get_tpu_info().vmem_capacity_bytes)
    except Exception:
        cap = 64 * 1024 * 1024          # conservative: works on every generation
    # v7x (64 MiB/TC) -> 48 MiB scoped; v5e/v6e (128 MiB) -> 96 MiB scoped.
    return max(32 * 1024 * 1024, min((cap * 3) // 4, 96 * 1024 * 1024))


def _pick_tile_hw(N, C, HW, pred_itemsize, footprint_budget):
    c_pad = _round_up(max(C, 1), 8)
    n_pad = _round_up(max(N, 1), 8)
    # Pipelined VMEM footprint per lane of spatial tile:
    per_lane = (2 * N * c_pad * pred_itemsize    # double-buffered pred blocks
                + 2 * n_pad * 4                  # double-buffered label blocks
                + N * c_pad * 4)                 # f32 accumulator scratch
    tile = footprint_budget // per_lane
    if tile >= HW:
        return HW                                # single full-extent block
    return max(128, (tile // 128) * 128)         # lane-aligned tile


# ---------------------------------------------------------------------------
# Wrapper.
# ---------------------------------------------------------------------------
def cnn_segmentation_model_loss(pred, label, mat, l2_reg_scale=0.01,
                                tile_hw=None, num_parallel_chunks=None):
    """pred: (N, C, H, W) log-probs, label: (N, H, W) int, mat: float matrix."""
    N, C, H, W = pred.shape
    HW = H * W
    P = N * HW

    # Layout-preserving reshapes only (no transpose, no extra HBM pass).
    pred3 = pred.reshape(N, C, HW)
    label2 = label.reshape(N, HW)
    if label2.dtype != jnp.int32:
        label2 = label2.astype(jnp.int32)

    vmem_limit = _vmem_limit_bytes()
    footprint_budget = (vmem_limit * 3) // 4     # headroom for compiler temps

    if tile_hw is None:
        tile_hw = _pick_tile_hw(N, C, HW, pred3.dtype.itemsize, footprint_budget)
    # Enforce last-dim lane constraint: multiple of 128 or full extent.
    if tile_hw >= HW:
        tile_hw = HW
    else:
        tile_hw = max(128, (tile_hw // 128) * 128)

    n_blocks = _cdiv(HW, tile_hw)
    if num_parallel_chunks is None:
        num_parallel_chunks = 2 if n_blocks >= 2 else 1   # v7x: one chunk per TC
    n_par = max(1, min(num_parallel_chunks, n_blocks))
    n_steps = _cdiv(n_blocks, n_par)

    def spatial_block(c, t):
        # Clamp so every DMA stays in-bounds; the in-kernel position mask
        # zeroes out any duplicated / tail data.
        return jnp.minimum(c * n_steps + t, n_blocks - 1)

    kernel = functools.partial(
        _nll_partial_kernel, n_steps=n_steps, tile_hw=tile_hw, hw_total=HW)

    cost = pl.CostEstimate(
        flops=3 * N * C * HW,
        transcendentals=0,
        bytes_accessed=(pred3.size * pred3.dtype.itemsize
                        + label2.size * label2.dtype.itemsize
                        + n_par * 8 * 128 * 4),
    )

    partials = pl.pallas_call(
        kernel,
        out_shape=jax.ShapeDtypeStruct((n_par, 8, 128), jnp.float32),
        grid_spec=pltpu.PrefetchScalarGridSpec(
            num_scalar_prefetch=0,
            grid=(n_par, n_steps),
            in_specs=[
                # pred tile: full N and C, lane-dense spatial tile.
                pl.BlockSpec((N, C, tile_hw),
                             lambda c, t: (0, 0, spatial_block(c, t))),
                # label tile: lane-dense, matches pred spatial tiling.
                pl.BlockSpec((N, tile_hw),
                             lambda c, t: (0, spatial_block(c, t))),
            ],
            # One lane-padded partial-sum row per parallel chunk.
            out_specs=pl.BlockSpec((1, 8, 128), lambda c, t: (c, 0, 0)),
            scratch_shapes=[pltpu.VMEM((N, C, tile_hw), jnp.float32)],
        ),
        compiler_params=pltpu.CompilerParams(
            dimension_semantics=("parallel", "arbitrary"),
            vmem_limit_bytes=vmem_limit,
        ),
        cost_estimate=cost,
    )(pred3, label2)

    # Trivial follow-up kernel: fold partials into the final mat-shaped loss.
    out = pl.pallas_call(
        functools.partial(_combine_kernel,
                          inv_p=float(1.0 / P),
                          reg_coef=float(0.5 * l2_reg_scale)),
        out_shape=jax.ShapeDtypeStruct(mat.shape, jnp.float32),
    )(partials, mat)
    return out


# ---------------------------------------------------------------------------
# Pure-JAX reference mirroring F.nll_loss(mean) + mat**2/2 * scale.
# ---------------------------------------------------------------------------
def _reference(pred, label, mat, l2_reg_scale=0.01):
    N, C, H, W = pred.shape
    p = jnp.transpose(pred, (0, 2, 3, 1)).reshape(-1, C)
    y = label.reshape(-1)
    nll = -jnp.mean(jnp.take_along_axis(p, y[:, None], axis=1))
    return nll + (mat ** 2) / 2.0 * l2_reg_scale


if __name__ == "__main__":
    key = jax.random.PRNGKey(0)
    k1, k2, k3, k4, k5 = jax.random.split(key, 5)

    # --- Test 1: small shapes, single block, default tiling -----------------
    N, C, H, W = 2, 4, 16, 16
    logits = jax.random.normal(k1, (N, C, H, W), dtype=jnp.float32)
    pred = jax.nn.log_softmax(logits, axis=1)                   # log-probs
    label = jax.random.randint(k2, (N, H, W), 0, C, dtype=jnp.int32)
    mat = jax.random.normal(k3, (8, 128), dtype=jnp.float32)

    ref = _reference(pred, label, mat, l2_reg_scale=0.01)
    out = cnn_segmentation_model_loss(pred, label, mat, l2_reg_scale=0.01)
    out = jax.block_until_ready(out)
    assert out.shape == ref.shape == mat.shape
    assert jnp.allclose(out, ref, atol=1e-5, rtol=1e-5), "mismatch vs reference"

    # --- Test 2: H*W not a multiple of the tile -> parallel chunks + masked
    # tail + clamped duplicate block ------------------------------------------
    H2 = W2 = 18                                                # HW = 324
    logits2 = jax.random.normal(k4, (N, C, H2, W2), dtype=jnp.float32)
    pred2 = jax.nn.log_softmax(logits2, axis=1)
    label2 = jax.random.randint(k5, (N, H2, W2), 0, C, dtype=jnp.int32)

    ref2 = _reference(pred2, label2, mat, l2_reg_scale=0.01)
    out2 = cnn_segmentation_model_loss(pred2, label2, mat,
                                       l2_reg_scale=0.01, tile_hw=128)
    out2 = jax.block_until_ready(out2)
    assert jnp.allclose(out2, ref2, atol=1e-5, rtol=1e-5), "tiled mismatch"

    # --- Test 3: single-chunk multi-step reduction path ----------------------
    out3 = cnn_segmentation_model_loss(pred2, label2, mat, l2_reg_scale=0.01,
                                       tile_hw=128, num_parallel_chunks=1)
    out3 = jax.block_until_ready(out3)
    assert jnp.allclose(out3, ref2, atol=1e-5, rtol=1e-5), "sequential mismatch"

    print("KERNEL_OK")
</pallas_src>

<mosaic_0001>
module attributes {stable_mosaic.version = 11 : i64} {
  func.func @_nll_partial_kernel(%arg0: i32, %arg1: i32, %arg2: memref<2x4x256xf32, #tpu.memory_space<vmem>>, %arg3: memref<2x256xi32, #tpu.memory_space<vmem>>, %arg4: memref<1x8x128xf32, #tpu.memory_space<vmem>>, %arg5: memref<2x4x256xf32, #tpu.memory_space<vmem>>) attributes {dimension_semantics = [#tpu.dimension_semantics<parallel>, #tpu.dimension_semantics<arbitrary>], iteration_bounds = array<i64: 1, 1>, scalar_prefetch = 0 : i64, scratch_operands = 1 : i64, tpu.core_type = #tpu.core_type<tc>, window_params = [{transform_indices = @transform_0, window_bounds = array<i64: 2, 4, 256>}, {transform_indices = @transform_1, window_bounds = array<i64: 2, 256>}, {transform_indices = @transform_2, window_bounds = array<i64: 1, 8, 128>}]} {
    %c0_i32 = arith.constant 0 : i32
    %0 = arith.cmpi eq, %arg1, %c0_i32 : i32
    %1 = arith.extui %0 : i1 to i32
    %c0_i32_0 = arith.constant 0 : i32
    %2 = arith.cmpi ne, %1, %c0_i32_0 : i32
    scf.if %2 {
      %cst_14 = arith.constant 0.000000e+00 : f32
      %26 = vector.broadcast %cst_14 : f32 to vector<2x4x256xf32>
      %c0_15 = arith.constant 0 : index
      %c0_16 = arith.constant 0 : index
      %c0_17 = arith.constant 0 : index
      %27 = vector.load %arg5[%c0_15, %c0_16, %c0_17] : memref<2x4x256xf32, #tpu.memory_space<vmem>>, vector<2x4x256xf32>
      tpu.vector_store %arg5[%c0_15, %c0_16, %c0_17], %26 {strides = array<i32>} : memref<2x4x256xf32, #tpu.memory_space<vmem>>, vector<2x4x256xf32>,
    } else {
    }
    %c0 = arith.constant 0 : index
    %c0_1 = arith.constant 0 : index
    %c0_2 = arith.constant 0 : index
    %3 = vector.load %arg2[%c0, %c0_1, %c0_2] : memref<2x4x256xf32, #tpu.memory_space<vmem>>, vector<2x4x256xf32>
    %c0_3 = arith.constant 0 : index
    %c0_4 = arith.constant 0 : index
    %4 = vector.load %arg3[%c0_3, %c0_4] : memref<2x256xi32, #tpu.memory_space<vmem>>, vector<2x256xi32>
    %c1_i32 = arith.constant 1 : i32
    %5 = arith.muli %arg0, %c1_i32 : i32
    %6 = arith.addi %5, %arg1 : i32
    %7 = tpu.iota {dimensions = array<i32: 1>} : vector<2x4x256xi32>
    %c256_i32 = arith.constant 256 : i32
    %8 = arith.muli %6, %c256_i32 : i32
    %9 = tpu.iota {dimensions = array<i32: 2>} : vector<2x4x256xi32>
    %10 = vector.broadcast %8 : i32 to vector<2x4x256xi32>
    %11 = arith.addi %10, %9 : vector<2x4x256xi32>
    %12 = vector.shape_cast %4 : vector<2x256xi32> to vector<2x1x256xi32>
    %13 = vector.broadcast %12 : vector<2x1x256xi32> to vector<2x4x256xi32>
    %14 = arith.cmpi eq, %7, %13 : vector<2x4x256xi32>
    %c256_i32_5 = arith.constant 256 : i32
    %15 = vector.broadcast %c256_i32_5 : i32 to vector<2x4x256xi32>
    %16 = arith.cmpi slt, %11, %15 : vector<2x4x256xi32>
    %17 = arith.andi %14, %16 : vector<2x4x256xi1>
    %c0_6 = arith.constant 0 : index
    %c0_7 = arith.constant 0 : index
    %c0_8 = arith.constant 0 : index
    %18 = vector.load %arg5[%c0_6, %c0_7, %c0_8] : memref<2x4x256xf32, #tpu.memory_space<vmem>>, vector<2x4x256xf32>
    %cst = arith.constant 0.000000e+00 : f32
    %19 = vector.broadcast %cst : f32 to vector<2x4x256xf32>
    %20 = arith.select %17, %3, %19 : vector<2x4x256xi1>, vector<2x4x256xf32>
    %21 = arith.addf %18, %20 : vector<2x4x256xf32>
    %c0_9 = arith.constant 0 : index
    %c0_10 = arith.constant 0 : index
    %c0_11 = arith.constant 0 : index
    %22 = vector.load %arg5[%c0_9, %c0_10, %c0_11] : memref<2x4x256xf32, #tpu.memory_space<vmem>>, vector<2x4x256xf32>
    tpu.vector_store %arg5[%c0_9, %c0_10, %c0_11], %21 {strides = array<i32>} : memref<2x4x256xf32, #tpu.memory_space<vmem>>, vector<2x4x256xf32>,
    %c0_i32_12 = arith.constant 0 : i32
    %23 = arith.cmpi eq, %arg1, %c0_i32_12 : i32
    %24 = arith.extui %23 : i1 to i32
    %c0_i32_13 = arith.constant 0 : i32
    %25 = arith.cmpi ne, %24, %c0_i32_13 : i32
    scf.if %25 {
      %c0_14 = arith.constant 0 : index
      %c0_15 = arith.constant 0 : index
      %c0_16 = arith.constant 0 : index
      %26 = vector.load %arg5[%c0_14, %c0_15, %c0_16] : memref<2x4x256xf32, #tpu.memory_space<vmem>>, vector<2x4x256xf32>
      %27 = vector.shape_cast %26 : vector<2x4x256xf32> to vector<1x2x4x256xf32>
      %cst_17 = arith.constant dense<0.000000e+00> : vector<1xf32>
      %28 = vector.multi_reduction <add>, %27, %cst_17 [1, 2, 3] : vector<1x2x4x256xf32> to vector<1xf32>
      %29 = vector.shape_cast %28 : vector<1xf32> to vector<1x1x1x1xf32>
      %30 = vector.extract %29[0, 0, 0, 0] : f32 from vector<1x1x1x1xf32>
      %31 = tpu.iota {dimensions = array<i32: 1>} : vector<1x8x128xi32>
      %32 = tpu.iota {dimensions = array<i32: 2>} : vector<1x8x128xi32>
      %c0_i32_18 = arith.constant 0 : i32
      %33 = vector.broadcast %c0_i32_18 : i32 to vector<1x8x128xi32>
      %34 = arith.cmpi eq, %31, %33 : vector<1x8x128xi32>
      %c0_i32_19 = arith.constant 0 : i32
      %35 = vector.broadcast %c0_i32_19 : i32 to vector<1x8x128xi32>
      %36 = arith.cmpi eq, %32, %35 : vector<1x8x128xi32>
      %37 = arith.andi %34, %36 : vector<1x8x128xi1>
      %cst_20 = arith.constant 0.000000e+00 : f32
      %38 = vector.broadcast %30 : f32 to vector<1x8x128xf32>
      %39 = vector.broadcast %cst_20 : f32 to vector<1x8x128xf32>
      %40 = arith.select %37, %38, %39 : vector<1x8x128xi1>, vector<1x8x128xf32>
      %c0_21 = arith.constant 0 : index
      %c0_22 = arith.constant 0 : index
      %c0_23 = arith.constant 0 : index
      %41 = vector.load %arg4[%c0_21, %c0_22, %c0_23] : memref<1x8x128xf32, #tpu.memory_space<vmem>>, vector<1x8x128xf32>
      tpu.vector_store %arg4[%c0_21, %c0_22, %c0_23], %40 {strides = array<i32>} : memref<1x8x128xf32, #tpu.memory_space<vmem>>, vector<1x8x128xf32>,
    } else {
    }
    return
  }
  func.func @transform_0(%arg0: i32, %arg1: i32) -> (i32, i32, i32) {
    %c1_i32 = arith.constant 1 : i32
    %0 = arith.muli %arg0, %c1_i32 : i32
    %1 = arith.addi %0, %arg1 : i32
    %c0_i32 = arith.constant 0 : i32
    %2 = arith.minsi %1, %c0_i32 : i32
    %c0_i32_0 = arith.constant 0 : i32
    %c0_i32_1 = arith.constant 0 : i32
    %c0_i32_2 = arith.constant 0 : i32
    return %c0_i32_0, %c0_i32_1, %2 : i32, i32, i32
  }
  func.func @transform_1(%arg0: i32, %arg1: i32) -> (i32, i32) {
    %c1_i32 = arith.constant 1 : i32
    %0 = arith.muli %arg0, %c1_i32 : i32
    %1 = arith.addi %0, %arg1 : i32
    %c0_i32 = arith.constant 0 : i32
    %2 = arith.minsi %1, %c0_i32 : i32
    %c0_i32_0 = arith.constant 0 : i32
    %c0_i32_1 = arith.constant 0 : i32
    return %c0_i32_0, %2 : i32, i32
  }
  func.func @transform_2(%arg0: i32, %arg1: i32) -> (i32, i32, i32) {
    %c0_i32 = arith.constant 0 : i32
    %c0_i32_0 = arith.constant 0 : i32
    %c0_i32_1 = arith.constant 0 : i32
    return %arg0, %c0_i32, %c0_i32_0 : i32, i32, i32
  }
}

</mosaic_0001>

<llo_original>
// kernel: tpu_custom_call.1
$region0: #{tpu_custom_call.1}
  #allocation0 [shape = 'u32[]', space=smem, size = 0x4, offset = 0x4, fixed_abs, tag = 'smem constant byte address 0x4 - core index']
  #allocation1 [shape = 'u32[144,128]{1,0:T(1,128)}', space=vmem, size = 0x12000, scoped, tag = 'internal scratch']
  #allocation2 [shape = 'f32[2,4,256]{2,1,0:T(4,128)}', space=vmem, size = 0x2000, scoped, tag = 'scratch operand']
  %s0 = inlined_call_operand.hbm [shape: f32[2,4,256], index: 0, kind: input, shape index: {}]
  %s1 = inlined_call_operand.hbm [shape: s32[2,256], index: 1, kind: input, shape index: {}]
  %s2 = inlined_call_operand.hbm [shape: f32[1,8,128], index: 2, kind: output, shape index: {}]
  %s3 = sld [smem:[#allocation0]]
  $region34: #{tpu_custom_call.1} parent=0
    _
  %s5 = ssub.s32 1, %s3
  %s6 = scalar_select 0, %s5, %s3
  $region1: #{tpu_custom_call.1} parent=0
    #allocation3 [shape = 'u8[8192]{0}', space=vmem, size = 0x2000, scoped, tag = 'input window, operand 0, single buffered']
    #allocation4 [shape = 's32[1]{0}', space=sflag, size = 0x4, scoped, tag = 'scoped memory for tpu_custom_call.1']
    #allocation5 [shape = 's32[1]{0}', space=sflag, size = 0x4, scoped, tag = 'scoped memory for tpu_custom_call.1']
    #allocation6 [shape = 'u8[2048]{0}', space=vmem, size = 0x800, scoped, tag = 'input window, operand 1, single buffered']
    #allocation7 [shape = 's32[1]{0}', space=sflag, size = 0x4, scoped, tag = 'scoped memory for tpu_custom_call.1']
    #allocation8 [shape = 'u8[4096]{0}', space=vmem, size = 0x1000, scoped, tag = 'output window, operand 0, single buffered']
    %7 = vsyncpa [#allocation4], 0
    %8 = vsyncpa [#allocation7], 0
    %9 = vsyncpa [#allocation5], 0
    // Predicated region
    $region2: #{tpu_custom_call.1} parent=1 // pred_check
      _
    $region3: #{tpu_custom_call.1} parent=1 // pred_check_branch
      %11 = sbr.rel (0) target = $region5
    $region4: #{tpu_custom_call.1} parent=1 // pred_region
      %s12 = sadd.s32 0, 0
      %p13 = scmp.lt.s32.totalorder %s12, 0
      %s14 = scalar_select %p13, %s12, 0
      %s15 = smul.u32 2, %s14
      %s17 = ssub.s32 256, 256
      %18 = vsyncadd [#allocation4], %s17
      %s19 = smul.addr %s15, 64
      %s20 = scalar_lea.hbm %s0, %s19
      %s21 = sshll.u32 [#allocation3], 4
      %s22 = int_to_ptr.vmem [resolvable:$true] %s21
      %27 = dma.hbm_to_vmem [thread:$0]  %s20, 256, %s22, [#allocation4], 128, 128, 8
    $region5: #{tpu_custom_call.1} parent=1 // pred_fallthru
      _
    // Predicated region
    $region6: #{tpu_custom_call.1} parent=1 // pred_check
      _
    $region7: #{tpu_custom_call.1} parent=1 // pred_check_branch
      %29 = sbr.rel (0) target = $region9
    $region8: #{tpu_custom_call.1} parent=1 // pred_region
      %s30 = sadd.s32 0, 0
      %p31 = scmp.lt.s32.totalorder %s30, 0
      %s32 = scalar_select %p31, %s30, 0
      %s33 = smul.u32 2, %s32
      %s35 = ssub.s32 64, 64
      %36 = vsyncadd [#allocation7], %s35
      %s37 = smul.addr %s33, 32
      %s38 = scalar_lea.hbm %s1, %s37
      %s40 = sshll.u32 [#allocation6], 4
      %s41 = int_to_ptr.vmem [resolvable:$true] %s40
      %43 = dma.hbm_to_vmem [thread:$0]  %s38, 64, %s41, [#allocation7]
    $region9: #{tpu_custom_call.1} parent=1 // pred_fallthru
      _
    // Predicated region
    $region10: #{tpu_custom_call.1} parent=1 // pred_check
      _
    $region11: #{tpu_custom_call.1} parent=1 // pred_check_branch
      %45 = sbr.rel (0) target = $region13
    $region12: #{tpu_custom_call.1} parent=1 // pred_region
      %46 = dma.done [#allocation4], 256
    $region13: #{tpu_custom_call.1} parent=1 // pred_fallthru
      _
    // Predicated region
    $region14: #{tpu_custom_call.1} parent=1 // pred_check
      _
    $region15: #{tpu_custom_call.1} parent=1 // pred_check_branch
      %48 = sbr.rel (0) target = $region17
    $region16: #{tpu_custom_call.1} parent=1 // pred_region
      %49 = dma.done [#allocation7], 64
    $region17: #{tpu_custom_call.1} parent=1 // pred_fallthru
      _
    %s50 = sadd.s32 0, 0
    %p51 = scmp.lt.s32.totalorder %s50, 0
    %s52 = scalar_select %p51, %s50, 0
    %s53 = smul.u32 2, %s52
    %s54 = sadd.s32 0, 0
    %p55 = scmp.lt.s32.totalorder %s54, 0
    %s56 = scalar_select %p55, %s54, 0
    %s57 = smul.u32 2, %s56
    %p58 = scmp.eq.s32.totalorder 0, 0
    // Predicated region
    $region18: #{tpu_custom_call.1} parent=1 // pred_check
      %p59 = pneg %p58
    $region19: #{tpu_custom_call.1} parent=1 // pred_check_branch
      %61 = sbr.rel (%p59) target = $region21
    $region20: #{tpu_custom_call.1} parent=1 // pred_region
      %62 = vst [vmem:[#allocation2] sm:$0xff] 0.0
      %63 = vst [vmem:[#allocation2 + $0x8] sm:$0xff] 0.0
    $region21: #{tpu_custom_call.1} parent=1 // pred_fallthru
      _
    %v64 = vld [vmem:[#allocation3] sm:$0xff]
    %v65 = vld [vmem:[#allocation3 + $0x8] sm:$0xff]
    %v66 = vld [vmem:[#allocation6] sm:$0xf]
    %s67 = sadd.s32 0, 0
    %v68 = vlaneseq
    %v69 = vshrl.u32 %v68, 7
    %s70 = smul.u32 %s67, 256
    %v71 = vlaneseq
    %v72 = vand.u32 %v71, 127
    %v73 = vadd.s32 %v72, 128
    %v74 = vstv %s70
    %v75 = vadd.s32 %v74, %v72
    %v76 = vadd.s32 %v74, %v73
    %v78 = vunpack.c.l.s4 1966171168
    %v79 = vunpack.c.0.s8 %v78
    %v80 = vlaneseq
    %v81 = vshrl.u32 %v80, 7
    %v82 = vsub.s32 %v79, %v81
    %v83 = vrot.slane %v66, %v82
    %v84 = vcombine.high %v83, %v83
    %v85 = vlaneseq
    %v86 = vshrl.u32 %v85, 7
    %v87 = vsub.s32 0, %v86
    %v88 = vrot.slane %v83, %v87
    %v89 = vlaneseq
    %v90 = vshrl.u32 %v89, 7
    %v91 = vsub.s32 1, %v90
    %v92 = vrot.slane %v83, %v91
    %v93 = vlaneseq
    %v94 = vshrl.u32 %v93, 7
    %v95 = vsub.s32 0, %v94
    %v96 = vrot.slane %v84, %v95
    %v97 = vlaneseq
    %v98 = vshrl.u32 %v97, 7
    %v99 = vsub.s32 1, %v98
    %v100 = vrot.slane %v84, %v99
    %vm101 = vcmp.eq.s32.totalorder %v69, %v88
    %vm102 = vcmp.eq.s32.totalorder %v69, %v92
    %vm103 = vcmp.eq.s32.totalorder %v69, %v96
    %vm104 = vcmp.eq.s32.totalorder %v69, %v100
    %vm105 = vcmp.lt.s32.totalorder %v75, 256
    %vm106 = vcmp.lt.s32.totalorder %v76, 256
    %vm107 = vmand %vm101, %vm105
    %vm108 = vmand %vm102, %vm106
    %vm109 = vmand %vm103, %vm105
    %vm110 = vmand %vm104, %vm106
    %v111 = vld [vmem:[#allocation2] sm:$0xff]
    %v112 = vld [vmem:[#allocation2 + $0x8] sm:$0xff]
    %v115 = vcombine.high %v64, %v64
    %v116 = vcombine.high %v65, %v65
    %v119 = vsel %vm107, %v64, 0.0
    %v120 = vsel %vm108, %v115, 0.0
    %v121 = vsel %vm109, %v65, 0.0
    %v122 = vsel %vm110, %v116, 0.0
    %v127 = vcombine.low %v119, %v120
    %v128 = vcombine.low %v121, %v122
    %v131 = vadd.f32 %v111, %v127
    %v132 = vadd.f32 %v112, %v128
    %133 = vst [vmem:[#allocation2] sm:$0xff] %v131
    %134 = vst [vmem:[#allocation2 + $0x8] sm:$0xff] %v132
    // Predicated region
    $region22: #{tpu_custom_call.1} parent=1 // pred_check
      %p135 = pneg %p58
    $region23: #{tpu_custom_call.1} parent=1 // pred_check_branch
      %137 = sbr.rel (%p135) target = $region25
    $region24: #{tpu_custom_call.1} parent=1 // pred_region
      %v138 = vld [vmem:[#allocation2] sm:$0xff]
      %v139 = vld [vmem:[#allocation2 + $0x8] sm:$0xff]
      %v142 = vcombine.high %v138, %v138
      %v143 = vcombine.high %v139, %v139
      %vm146 = vcmask 1043456
      %v147 = vsel %vm146, %v138, 0.0
      %v148 = vsel %vm146, %v142, 0.0
      %v149 = vadd.f32 %v147, %v148
      %v150 = vsel %vm146, %v139, 0.0
      %v151 = vadd.f32 %v149, %v150
      %v152 = vsel %vm146, %v143, 0.0
      %v153 = vadd.f32 %v151, %v152
      %154 = vadd.xlane.f32.xlu0 %v153
      %v155 = vpop.xlane.xlu0 %154
      %v156 = vrot.slane %v155, 4
      %v157 = vadd.f32 %v155, %v156
      %v158 = vrot.slane %v157, 2
      %v159 = vadd.f32 %v157, %v158
      %v160 = vrot.slane %v159, 1
      %v161 = vadd.f32 %v159, %v160
      %s162 = vtos %v161
      %vm163 = vcmp.eq.s32.totalorder %v69, 0
      %vm164 = vcmp.eq.s32.totalorder %v72, 0
      %vm165 = vmand %vm163, %vm164
      %v166 = vstv %s162
      %v167 = vsel %vm165, %v166, 0.0
      %168 = vst [vmem:[#allocation8] sm:$0xff] %v167
    $region25: #{tpu_custom_call.1} parent=1 // pred_fallthru
      _
    // Predicated region
    $region26: #{tpu_custom_call.1} parent=1 // pred_check
      _
    $region27: #{tpu_custom_call.1} parent=1 // pred_check_branch
      %170 = sbr.rel (0) target = $region29
    $region28: #{tpu_custom_call.1} parent=1 // pred_region
      %s172 = ssub.s32 128, 128
      %173 = vsyncadd [#allocation5], %s172
      %s175 = sshll.u32 [#allocation8], 4
      %s176 = int_to_ptr.vmem [resolvable:$true] %s175
      %178 = dma.vmem_to_hbm [thread:$0]  %s176, 128, %s2, [#allocation5]
    $region29: #{tpu_custom_call.1} parent=1 // pred_fallthru
      _
    // Predicated region
    $region30: #{tpu_custom_call.1} parent=1 // pred_check
      _
    $region31: #{tpu_custom_call.1} parent=1 // pred_check_branch
      %180 = sbr.rel (0) target = $region33
    $region32: #{tpu_custom_call.1} parent=1 // pred_region
      %181 = dma.done [#allocation5], 128
    $region33: #{tpu_custom_call.1} parent=1 // pred_fallthru
      _
    %182 = vsyncpa [#allocation4], 1
    %183 = vsyncpa [#allocation7], 1
    %184 = vsyncpa [#allocation5], 1

</llo_original>
